<compile_context>
chip_gen: v5e
topology: v5e:2x2
jax: 0.10.0
libtpu: 0.0.40
codegen_flags: <defaults>
</compile_context>

<pallas_src>
import jax
import jax.numpy as jnp
from jax.experimental import pallas as pl
from jax.experimental.pallas import tpu as pltpu


def build_positional_encoding(embedding_dim: int, max_length: int = 128) -> jnp.ndarray:
    """Sinusoidal table identical to the PyTorch __init__; returns (max_length, D) float32."""
    assert embedding_dim % 2 == 0, "FixedPositionalEncoding requires an even embedding_dim"
    position = jnp.arange(max_length, dtype=jnp.float32)[:, None]                  # (L, 1)
    div_term = jnp.exp(
        jnp.arange(0, embedding_dim, 2, dtype=jnp.float32)
        * (-jnp.log(jnp.float32(10000.0)) / embedding_dim))                        # (D/2,)
    angles = position * div_term                                                   # (L, D/2)
    pe = jnp.stack([jnp.sin(angles), jnp.cos(angles)], axis=-1)                    # (L, D/2, 2)
    return pe.reshape(max_length, embedding_dim)                                   # 0::2 sin, 1::2 cos


# ------------------------------- kernels ------------------------------------ #

def _lane_bcast_add_kernel(x_ref, pe_ref, o_ref):
    """x_ref / o_ref: (tile_s, B*D) in x.dtype;  pe_ref: (tile_s, D) float32.

    Broadcast pe across the batch with static, 128-aligned lane slices (D % 128 == 0):
    every load/store is an unmasked full-vreg access, no relayout. pe is re-read from
    VMEM inside the loop (3 vld slots/cycle -> free) instead of being hoisted, so the
    live range stays one slice wide even for large batch (no spills / code bloat).
    The add runs in f32 (PyTorch promotes x + f32 buffer); the cast happens on store.
    """
    d = pe_ref.shape[-1]
    batch = x_ref.shape[-1] // d
    for b in range(batch):                       # static unroll; batch is small & known
        sl = slice(b * d, (b + 1) * d)
        o_ref[:, sl] = (x_ref[:, sl].astype(jnp.float32) + pe_ref[...]).astype(o_ref.dtype)


def _flat_add_kernel(x_ref, pe_ref, o_ref):
    """Lane-dense streaming add: x_ref/o_ref (tile_s, B*D) x.dtype, pe_ref same shape f32."""
    o_ref[...] = (x_ref[...].astype(jnp.float32) + pe_ref[...]).astype(o_ref.dtype)


# ---------------------------- tiling helpers --------------------------------- #

def _sublane_multiple(dtype) -> int:
    """Native sublane packing: 8 rows for 4-byte, 16 for 2-byte, 32 for 1-byte dtypes."""
    return max(8, 32 // jnp.dtype(dtype).itemsize)


def _pick_tile_rows(total_rows: int, row_bytes: int, tile_bytes: int, sub: int,
                    min_steps: int = 4) -> int:
    """Rows per block: <= ~tile_bytes of x, rounded down to the dtype's sublane multiple,
    and clamped so the 1-D grid has >= min_steps (even) steps whenever total_rows allows.
    That keeps DMA in/out overlapped and gives v7x's two TensorCores work even for
    inputs only slightly above the pallas threshold."""
    if total_rows <= sub:
        return total_rows                                     # single full-extent block
    steps = max(min_steps, pl.cdiv(total_rows * row_bytes, tile_bytes))
    if steps % 2:
        steps += 1                                            # even step count for 2 TCs
    tile = pl.cdiv(total_rows, steps)
    tile = max(sub, (tile // sub) * sub)                      # round down -> never fewer steps
    return min(tile, total_rows)


def _is_concrete_array(a) -> bool:
    """True for materialized jax Arrays (safe to cache across calls), False for tracers."""
    try:
        return not isinstance(a, jax.core.Tracer)
    except Exception:
        return False


# ------------------------------- wrapper -------------------------------------- #

def fixed_positional_encoding(
    x: jnp.ndarray,
    pe: jnp.ndarray,
    *,
    tile_bytes: int = 2 << 20,        # ~2 MiB of x per block: roofline-saturating, VMEM-safe
    min_pallas_bytes: int = 1 << 20,  # below this, fixed pallas_call overhead loses to XLA
    donate: bool = False,             # alias x -> out (for callers that donate x)
    pe_bcast_cache=None,              # dict cache for the batch-broadcast pe table
) -> jnp.ndarray:
    """x: (S, B, D); pe: (max_length, D) float32. Returns x + pe[:S, None, :] in x.dtype."""
    S, B, D = x.shape
    max_length, d_pe = pe.shape
    assert d_pe == D, "embedding_dim mismatch between x and pe"
    assert S <= max_length, "sequence length exceeds max_length of the pe table"

    pe_f32 = pe.astype(jnp.float32)
    itemsize = jnp.dtype(x.dtype).itemsize
    n = S * B * D

    # Tiny inputs: pallas_call fixed overhead dominates -> plain XLA (same f32-add numerics).
    if n * itemsize < min_pallas_bytes:
        return (x.astype(jnp.float32) + pe_f32[:S][:, None, :]).astype(x.dtype)

    sub = _sublane_multiple(x.dtype)
    x2 = x.reshape(S, B * D)                          # row-major contiguous -> free view
    row_bytes = B * D * itemsize
    tile_s = _pick_tile_rows(S, row_bytes, tile_bytes, sub)
    grid = (pl.cdiv(S, tile_s),)
    io_alias = {0: 0} if donate else {}
    cparams = pltpu.CompilerParams(dimension_semantics=("parallel",))

    if D % 128 == 0:
        # Bandwidth-optimal path: pe is read only once per sequence row (S*D f32 bytes
        # total) and broadcast across the batch in-kernel via 128-aligned lane slices.
        out2 = pl.pallas_call(
            _lane_bcast_add_kernel,
            out_shape=jax.ShapeDtypeStruct((S, B * D), x.dtype),
            grid_spec=pltpu.PrefetchScalarGridSpec(
                num_scalar_prefetch=0,
                grid=grid,
                in_specs=[
                    pl.BlockSpec((tile_s, B * D), lambda i: (i, 0)),
                    # full pe table passed; index_map selects the rows (no pe[:S] copy)
                    pl.BlockSpec((tile_s, D), lambda i: (i, 0)),
                ],
                out_specs=pl.BlockSpec((tile_s, B * D), lambda i: (i, 0)),
            ),
            compiler_params=cparams,
            cost_estimate=pl.CostEstimate(
                flops=n, transcendentals=0,
                bytes_accessed=2 * n * itemsize + S * D * 4),
            input_output_aliases=io_alias,
        )(x2, pe_f32)
        return out2.reshape(S, B, D)

    # Generic path (D not a multiple of 128): keep every block lane-dense by using a
    # batch-broadcast pe table (last block dim == full B*D). The (max_length, B*D) f32
    # table is bounded by max_length*B*D and is built ONCE per batch size and cached
    # across calls -- no per-call n-byte broadcast materialization + read-back.
    # TODO(synk): computing pe in-kernel (iota + sin/cos on the EUP) would remove this
    # HBM read too, but is not relied on here to keep Mosaic lowering risk-free.
    use_cache = (pe_bcast_cache is not None) and _is_concrete_array(pe_f32)
    key = (int(B), int(max_length), int(D))
    if use_cache and key in pe_bcast_cache:
        pe_b = pe_bcast_cache[key]
    else:
        pe_b = jnp.broadcast_to(pe_f32[:, None, :], (max_length, B, D)).reshape(max_length, B * D)
        if use_cache:
            pe_bcast_cache[key] = pe_b

    out2 = pl.pallas_call(
        _flat_add_kernel,
        out_shape=jax.ShapeDtypeStruct((S, B * D), x.dtype),
        grid_spec=pltpu.PrefetchScalarGridSpec(
            num_scalar_prefetch=0,
            grid=grid,
            in_specs=[
                pl.BlockSpec((tile_s, B * D), lambda i: (i, 0)),
                pl.BlockSpec((tile_s, B * D), lambda i: (i, 0)),
            ],
            out_specs=pl.BlockSpec((tile_s, B * D), lambda i: (i, 0)),
        ),
        compiler_params=cparams,
        cost_estimate=pl.CostEstimate(
            flops=n, transcendentals=0,
            bytes_accessed=2 * n * itemsize + n * 4),
        input_output_aliases=io_alias,
    )(x2, pe_b)
    return out2.reshape(S, B, D)


class FixedPositionalEncoding:
    """Mirror of the PyTorch module: owns the pe buffer and a per-batch broadcast cache."""

    def __init__(self, embedding_dim: int, max_length: int = 128):
        self.embedding_dim = embedding_dim
        self.max_length = max_length
        self.pe = build_positional_encoding(embedding_dim, max_length)   # (L, D) f32 buffer
        self._pe_bcast_cache = {}

    def __call__(self, x, **kwargs):
        return fixed_positional_encoding(x, self.pe, pe_bcast_cache=self._pe_bcast_cache, **kwargs)


# ------------------------------ demo / check ---------------------------------- #

if __name__ == "__main__":
    # 1) Generic path (D % 128 != 0): class with cached batch-broadcast pe table.
    S, B, D = 8, 2, 32
    enc = FixedPositionalEncoding(D, max_length=128)
    x = jax.random.normal(jax.random.PRNGKey(0), (S, B, D), dtype=jnp.float32)
    out = jax.block_until_ready(enc(x, min_pallas_bytes=0))      # force the kernel path
    ref = x + enc.pe[:S][:, None, :]
    assert out.shape == (S, B, D)
    assert jnp.allclose(out, ref, atol=1e-6), "flat-path mismatch vs reference"
    out_again = jax.block_until_ready(enc(x, min_pallas_bytes=0))  # second call: cache hit
    assert jnp.allclose(out_again, ref, atol=1e-6), "flat-path (cached pe) mismatch"

    # 2) Lane-aligned path with a multi-step "parallel" grid (4 steps at default tiles).
    S2, B2, D2 = 128, 4, 256
    pe2 = build_positional_encoding(D2, 128)
    x2 = jax.random.normal(jax.random.PRNGKey(0), (S2, B2, D2), dtype=jnp.float32)
    out2 = jax.block_until_ready(fixed_positional_encoding(x2, pe2, min_pallas_bytes=0))
    ref2 = x2 + pe2[:S2][:, None, :]
    assert jnp.allclose(out2, ref2, atol=1e-6), "lanes-path mismatch vs reference"

    # 3) Ragged boundary: S == max_length and S % tile_s != 0 (grid of 5, partial last block
    #    on both x and the pe table) -- exercises the masked-edge handling.
    S3, B3, D3, L3 = 100, 2, 128, 100
    pe3 = build_positional_encoding(D3, L3)
    x3 = jax.random.normal(jax.random.PRNGKey(0), (S3, B3, D3), dtype=jnp.float32)
    out3 = jax.block_until_ready(fixed_positional_encoding(x3, pe3, min_pallas_bytes=0))
    ref3 = x3 + pe3[:S3][:, None, :]
    assert jnp.allclose(out3, ref3, atol=1e-6), "ragged-boundary mismatch vs reference"

    # 4) bf16 activations (sublane multiple 16), f32 in-kernel add, donated/aliased input.
    S4, B4, D4 = 64, 4, 128
    pe4 = build_positional_encoding(D4, 128)
    x4 = jax.random.normal(jax.random.PRNGKey(0), (S4, B4, D4), dtype=jnp.bfloat16)
    ref4 = (x4.astype(jnp.float32) + pe4[:S4][:, None, :]).astype(jnp.bfloat16)
    f4 = jax.jit(lambda a: fixed_positional_encoding(a, pe4, min_pallas_bytes=0, donate=True),
                 donate_argnums=0)
    out4 = jax.block_until_ready(f4(x4))
    assert jnp.allclose(out4.astype(jnp.float32), ref4.astype(jnp.float32), atol=1e-2), \
        "bf16 / donated-input mismatch vs reference"

    print("KERNEL_OK")
</pallas_src>

<mosaic_0001>
module attributes {stable_mosaic.version = 11 : i64} {
  func.func @_flat_add_kernel(%arg0: i32, %arg1: memref<8x64xf32, #tpu.memory_space<vmem>>, %arg2: memref<8x64xf32, #tpu.memory_space<vmem>>, %arg3: memref<8x64xf32, #tpu.memory_space<vmem>>) attributes {dimension_semantics = [#tpu.dimension_semantics<parallel>], iteration_bounds = array<i64: 1>, scalar_prefetch = 0 : i64, scratch_operands = 0 : i64, tpu.core_type = #tpu.core_type<tc>, window_params = [{transform_indices = @transform_0, window_bounds = array<i64: 8, 64>}, {transform_indices = @transform_1, window_bounds = array<i64: 8, 64>}, {transform_indices = @transform_2, window_bounds = array<i64: 8, 64>}]} {
    %c0 = arith.constant 0 : index
    %c0_0 = arith.constant 0 : index
    %0 = vector.load %arg1[%c0, %c0_0] : memref<8x64xf32, #tpu.memory_space<vmem>>, vector<8x64xf32>
    %c0_1 = arith.constant 0 : index
    %c0_2 = arith.constant 0 : index
    %1 = vector.load %arg2[%c0_1, %c0_2] : memref<8x64xf32, #tpu.memory_space<vmem>>, vector<8x64xf32>
    %2 = arith.addf %0, %1 : vector<8x64xf32>
    %c0_3 = arith.constant 0 : index
    %c0_4 = arith.constant 0 : index
    %3 = vector.load %arg3[%c0_3, %c0_4] : memref<8x64xf32, #tpu.memory_space<vmem>>, vector<8x64xf32>
    tpu.vector_store %arg3[%c0_3, %c0_4], %2 {strides = array<i32>} : memref<8x64xf32, #tpu.memory_space<vmem>>, vector<8x64xf32>,
    return
  }
  func.func @transform_0(%arg0: i32) -> (i32, i32) {
    %c0_i32 = arith.constant 0 : i32
    %c0_i32_0 = arith.constant 0 : i32
    return %arg0, %c0_i32 : i32, i32
  }
  func.func @transform_1(%arg0: i32) -> (i32, i32) {
    %c0_i32 = arith.constant 0 : i32
    %c0_i32_0 = arith.constant 0 : i32
    return %arg0, %c0_i32 : i32, i32
  }
  func.func @transform_2(%arg0: i32) -> (i32, i32) {
    %c0_i32 = arith.constant 0 : i32
    %c0_i32_0 = arith.constant 0 : i32
    return %arg0, %c0_i32 : i32, i32
  }
}

</mosaic_0001>

<llo_original>
// kernel: tpu_custom_call.1
$region0: #{tpu_custom_call.1}
  #allocation0 [shape = 'u32[]', space=smem, size = 0x4, offset = 0x4, fixed_abs, tag = 'smem constant byte address 0x4 - core index']
  #allocation1 [shape = 'u32[72,128]{1,0:T(1,128)}', space=vmem, size = 0x9000, scoped, tag = 'internal scratch']
  %s0 = inlined_call_operand.vmem [shape: f32[8,64], index: 0, kind: input, shape index: {}]
  %s1 = inlined_call_operand.vmem [shape: f32[128,64], index: 1, kind: input, shape index: {}]
  %s2 = inlined_call_operand.hbm [shape: f32[8,64], index: 2, kind: output, shape index: {}]
  %s3 = sld [smem:[#allocation0]]
  $region18: #{tpu_custom_call.1} parent=0
    _
  %s5 = ssub.s32 1, %s3
  %s6 = scalar_select 0, %s5, %s3
  $region1: #{tpu_custom_call.1} parent=0
    #allocation2 [shape = 'u8[4096]{0}', space=vmem, size = 0x1000, scoped, tag = 'output window, operand 0, single buffered']
    #allocation3 [shape = 's32[1]{0}', space=sflag, size = 0x4, scoped, tag = 'scoped memory for tpu_custom_call.1']
    %7 = vsyncpa [#allocation3], 0
    // Predicated region
    $region2: #{tpu_custom_call.1} parent=1 // pred_check
      _
    $region3: #{tpu_custom_call.1} parent=1 // pred_check_branch
      %9 = sbr.rel (0) target = $region5
    $region4: #{tpu_custom_call.1} parent=1 // pred_region
      _
    $region5: #{tpu_custom_call.1} parent=1 // pred_fallthru
      _
    // Predicated region
    $region6: #{tpu_custom_call.1} parent=1 // pred_check
      _
    $region7: #{tpu_custom_call.1} parent=1 // pred_check_branch
      %11 = sbr.rel (0) target = $region9
    $region8: #{tpu_custom_call.1} parent=1 // pred_region
      _
    $region9: #{tpu_custom_call.1} parent=1 // pred_fallthru
      _
    %v12 = vld [vmem:[%s0] sm:$0xff]
    %v13 = vld [vmem:[%s1] sm:$0xff]
    %v14 = vadd.f32 %v12, %v13
    %vm15 = vcmask 523264
    %16 = vst.msk [vmem:[#allocation2] sm:$0xff] %vm15, %v14
    // Predicated region
    $region10: #{tpu_custom_call.1} parent=1 // pred_check
      _
    $region11: #{tpu_custom_call.1} parent=1 // pred_check_branch
      %18 = sbr.rel (0) target = $region13
    $region12: #{tpu_custom_call.1} parent=1 // pred_region
      %20 = vsyncadd [#allocation3], 0
      %s22 = sshll.u32 [#allocation2], 4
      %s23 = int_to_ptr.vmem [resolvable:$true] %s22
      %s24 = sshll.u32 %s2, 4
      %s25 = int_to_ptr.hbm [resolvable:$true] %s24
      %27 = dma.vmem_to_hbm [thread:$0]  %s23, 128, %s25, [#allocation3]
    $region13: #{tpu_custom_call.1} parent=1 // pred_fallthru
      _
    // Predicated region
    $region14: #{tpu_custom_call.1} parent=1 // pred_check
      _
    $region15: #{tpu_custom_call.1} parent=1 // pred_check_branch
      %29 = sbr.rel (0) target = $region17
    $region16: #{tpu_custom_call.1} parent=1 // pred_region
      %31 = dma.done [#allocation3], 128
    $region17: #{tpu_custom_call.1} parent=1 // pred_fallthru
      _
    %32 = vsyncpa [#allocation3], 1

</llo_original>
